<compile_context>
chip_gen: v7x
topology: tpu7x:2x2x1
jax: 0.10.0
libtpu: 0.0.40
codegen_flags: <defaults>
</compile_context>

<pallas_src>
import functools
import math

import jax
import jax.numpy as jnp
from jax import lax
from jax.experimental import pallas as pl
from jax.experimental.pallas import tpu as pltpu


def _round_up(n, m):
    return ((n + m - 1) // m) * m


# ---------------------------------------------------------------------------
# Kernel 1: row-wise L2 normalization of x (done once, reused for every C tile).
# ---------------------------------------------------------------------------
def _row_l2_normalize_kernel(x_ref, o_ref):
    x = x_ref[...].astype(jnp.float32)
    # F.normalize(x, dim=1): x / max(||x||, 1e-12) == x * rsqrt(max(||x||^2, 1e-24))
    inv = lax.rsqrt(jnp.maximum(jnp.sum(x * x, axis=-1, keepdims=True), 1e-24))
    o_ref[...] = x * inv


def _row_l2_normalize(x, tile_rows):
    rows, d = x.shape  # rows is already a multiple of tile_rows
    return pl.pallas_call(
        _row_l2_normalize_kernel,
        out_shape=jax.ShapeDtypeStruct((rows, d), jnp.float32),
        grid=(rows // tile_rows,),
        in_specs=[pl.BlockSpec((tile_rows, d), lambda i: (i, 0))],
        out_specs=pl.BlockSpec((tile_rows, d), lambda i: (i, 0)),
        compiler_params=pltpu.CompilerParams(dimension_semantics=("parallel",)),
    )(x)


# ---------------------------------------------------------------------------
# Kernel 2: per (batch-tile, class-tile): normalize W tile, cosine matmul (MXU),
#           arc-margin math, one-hot select.
# ---------------------------------------------------------------------------
def _arc_margin_kernel(label_ref, xn_ref, w_ref, o_ref, *, s, cos_m, sin_m, th,
                       mm, easy_margin, tc, matmul_dtype):
    j = pl.program_id(1)                        # class-tile index

    xn = xn_ref[...]                            # (TB, D) already L2-normalized, f32
    w = w_ref[...].astype(jnp.float32)          # (TC, D)

    # Normalize this weight tile (zero-padded rows stay exactly zero).
    inv_wn = lax.rsqrt(jnp.maximum(jnp.sum(w * w, axis=-1, keepdims=True), 1e-24))
    wn = w * inv_wn

    # cosine = xn @ wn.T expressed as dot_general contracting the last dims of both
    # operands -> no materialized transpose of the weight tile before the MXU.
    cosine = lax.dot_general(
        xn.astype(matmul_dtype), wn.astype(matmul_dtype),
        dimension_numbers=(((1,), (1,)), ((), ())),
        preferred_element_type=jnp.float32)     # (TB, TC), f32 accumulate

    sine = jnp.sqrt(jnp.clip(1.0 - cosine * cosine, 0.0, 1.0))
    phi = cosine * cos_m - sine * sin_m
    if easy_margin:
        phi = jnp.where(cosine > 0.0, phi, cosine)
    else:
        phi = jnp.where(cosine > th, phi, cosine - mm)

    tb = cosine.shape[0]
    # Global class id of every output column in this class tile.
    col = lax.broadcasted_iota(jnp.int32, (tb, tc), 1) + j * tc
    one_hot = col == label_ref[...]             # label block is (TB, 1) int32

    o_ref[...] = (jnp.where(one_hot, phi, cosine) * s).astype(o_ref.dtype)


def arc_margin_product(x, weight, label, *, s=30.0, m=0.5, easy_margin=False,
                       tb=128, tc=512, matmul_dtype=jnp.float32):
    """ArcFace margin head. x: (B, D) f32, weight: (C, D) f32, label: (B,) int.

    Returns (B, C) f32 logits: s * (one_hot * phi + (1 - one_hot) * cosine).
    """
    B, D = x.shape
    C, _ = weight.shape

    # ---- tile sizes ---------------------------------------------------------
    # Batch tile: multiple of 8 sublanes.  Class tile: multiple of 128 lanes so
    # the output slab is lane-dense (unmasked vector stores).  Clamped to the
    # (padded) problem size; defaults (128, 512) keep the double-buffered VMEM
    # footprint small enough for v7x's 64 MiB as well as v5e/v6e.
    TB = _round_up(min(tb, _round_up(B, 8)), 8)
    TC = _round_up(min(tc, _round_up(C, 128)), 128)
    Bp = _round_up(B, TB)
    Cp = _round_up(C, TC)

    # ---- pad operands (padded rows/classes are sliced off at the end) --------
    x_p = x.astype(jnp.float32)
    if Bp != B:
        x_p = jnp.pad(x_p, ((0, Bp - B), (0, 0)))
    w_p = weight.astype(jnp.float32)
    if Cp != C:
        w_p = jnp.pad(w_p, ((0, Cp - C), (0, 0)))
    label_p = label.astype(jnp.int32).reshape(-1, 1)
    if Bp != B:
        label_p = jnp.pad(label_p, ((0, Bp - B), (0, 0)), constant_values=-1)

    # ---- hoisted x normalization (once, not once per class tile) -------------
    x_norm = _row_l2_normalize(x_p, TB)

    grid = (Bp // TB, Cp // TC)

    kernel = functools.partial(
        _arc_margin_kernel,
        s=float(s),
        cos_m=math.cos(m),
        sin_m=math.sin(m),
        th=math.cos(math.pi - m),
        mm=math.sin(math.pi - m) * m,
        easy_margin=easy_margin,
        tc=TC,
        matmul_dtype=matmul_dtype,
    )

    cost = pl.CostEstimate(
        flops=2 * Bp * Cp * D + 3 * Cp * D + 10 * Bp * Cp,
        transcendentals=Bp * Cp + Cp,
        bytes_accessed=4 * (Bp * D + Cp * D + Bp * Cp + Bp),
    )

    out_padded = pl.pallas_call(
        kernel,
        out_shape=jax.ShapeDtypeStruct((Bp, Cp), jnp.float32),
        grid=grid,
        in_specs=[
            pl.BlockSpec((TB, 1), lambda i, j: (i, 0)),   # labels
            pl.BlockSpec((TB, D), lambda i, j: (i, 0)),   # normalized x
            pl.BlockSpec((TC, D), lambda i, j: (j, 0)),   # streamed weight tiles
        ],
        out_specs=pl.BlockSpec((TB, TC), lambda i, j: (i, j)),
        compiler_params=pltpu.CompilerParams(
            # Both grid axes are independent -> megacore-shardable on v7x.
            dimension_semantics=("parallel", "parallel"),
            # Explicit limit, comfortably under v7x's 64 MiB per-TC VMEM.
            vmem_limit_bytes=48 * 1024 * 1024,
        ),
        cost_estimate=cost,
    )(label_p, x_norm, w_p)

    return out_padded[:B, :C]


def _xavier_uniform(key, shape):
    # torch.nn.init.xavier_uniform_ for a (out_features, in_features) matrix
    fan_out, fan_in = shape
    bound = math.sqrt(6.0 / (fan_in + fan_out))
    return jax.random.uniform(key, shape, jnp.float32, -bound, bound)


if __name__ == "__main__":
    in_features = 32
    out_features = 300   # pads to 384 classes -> exercises 3 class tiles of 128
    batch = 16           # with tb=8 -> 2 batch tiles

    key = jax.random.PRNGKey(0)
    k_x, k_w, k_l = jax.random.split(key, 3)

    x = jax.random.normal(k_x, (batch, in_features), jnp.float32)
    weight = _xavier_uniform(k_w, (out_features, in_features))
    label = jax.random.randint(k_l, (batch,), 0, out_features, jnp.int32)

    out = arc_margin_product(x, weight, label, s=30.0, m=0.5, easy_margin=False,
                             tb=8, tc=128)
    jax.block_until_ready(out)

    # Reference check in plain JAX (same math as the PyTorch forward).
    xn = x / jnp.maximum(jnp.linalg.norm(x, axis=1, keepdims=True), 1e-12)
    wn = weight / jnp.maximum(jnp.linalg.norm(weight, axis=1, keepdims=True), 1e-12)
    cosine = xn @ wn.T
    sine = jnp.sqrt(jnp.clip(1.0 - cosine**2, 0.0, 1.0))
    phi = cosine * math.cos(0.5) - sine * math.sin(0.5)
    phi = jnp.where(cosine > math.cos(math.pi - 0.5), phi,
                    cosine - math.sin(math.pi - 0.5) * 0.5)
    one_hot = jax.nn.one_hot(label, out_features, dtype=jnp.float32)
    ref = (one_hot * phi + (1.0 - one_hot) * cosine) * 30.0

    assert out.shape == ref.shape, (out.shape, ref.shape)
    assert jnp.allclose(out, ref, atol=1e-4, rtol=1e-4), "mismatch vs reference"
    print("KERNEL_OK")
</pallas_src>

<mosaic_0001>
module attributes {stable_mosaic.version = 11 : i64} {
  func.func @_row_l2_normalize_kernel(%arg0: i32, %arg1: memref<8x32xf32, #tpu.memory_space<vmem>>, %arg2: memref<8x32xf32, #tpu.memory_space<vmem>>) attributes {dimension_semantics = [#tpu.dimension_semantics<parallel>], iteration_bounds = array<i64: 2>, scalar_prefetch = 0 : i64, scratch_operands = 0 : i64, tpu.core_type = #tpu.core_type<tc>, window_params = [{transform_indices = @transform_0, window_bounds = array<i64: 8, 32>}, {transform_indices = @transform_1, window_bounds = array<i64: 8, 32>}]} {
    %c0 = arith.constant 0 : index
    %c0_0 = arith.constant 0 : index
    %0 = vector.load %arg1[%c0, %c0_0] : memref<8x32xf32, #tpu.memory_space<vmem>>, vector<8x32xf32>
    %1 = arith.mulf %0, %0 : vector<8x32xf32>
    %cst = arith.constant dense<0.000000e+00> : vector<8xf32>
    %2 = vector.multi_reduction <add>, %1, %cst [1] : vector<8x32xf32> to vector<8xf32>
    %3 = vector.shape_cast %2 : vector<8xf32> to vector<8x1xf32>
    %cst_1 = arith.constant 1.000000e-24 : f32
    %4 = vector.broadcast %cst_1 : f32 to vector<8x1xf32>
    %5 = arith.maximumf %3, %4 : vector<8x1xf32>
    %6 = math.rsqrt %5 : vector<8x1xf32>
    %7 = vector.broadcast %6 : vector<8x1xf32> to vector<8x32xf32>
    %8 = arith.mulf %0, %7 : vector<8x32xf32>
    %c0_2 = arith.constant 0 : index
    %c0_3 = arith.constant 0 : index
    %9 = vector.load %arg2[%c0_2, %c0_3] : memref<8x32xf32, #tpu.memory_space<vmem>>, vector<8x32xf32>
    tpu.vector_store %arg2[%c0_2, %c0_3], %8 {strides = array<i32>} : memref<8x32xf32, #tpu.memory_space<vmem>>, vector<8x32xf32>,
    return
  }
  func.func @transform_0(%arg0: i32) -> (i32, i32) {
    %c0_i32 = arith.constant 0 : i32
    %c0_i32_0 = arith.constant 0 : i32
    return %arg0, %c0_i32 : i32, i32
  }
  func.func @transform_1(%arg0: i32) -> (i32, i32) {
    %c0_i32 = arith.constant 0 : i32
    %c0_i32_0 = arith.constant 0 : i32
    return %arg0, %c0_i32 : i32, i32
  }
}

</mosaic_0001>

<llo_original>
// kernel: tpu_custom_call.1
$region0: #{tpu_custom_call.1}
  #allocation0 [shape = 'u32[]', space=smem, size = 0x4, offset = 0x4, fixed_abs, tag = 'smem constant byte address 0x4 - core index']
  #allocation1 [shape = 'u32[144,128]{1,0:T(1,128)}', space=vmem, size = 0x12000, scoped, tag = 'internal scratch']
  %s0 = inlined_call_operand.hbm [shape: f32[16,32], index: 0, kind: input, shape index: {}]
  %s1 = inlined_call_operand.hbm [shape: f32[16,32], index: 1, kind: output, shape index: {}]
  %s2 = sld [smem:[#allocation0]]
  $region41: #{tpu_custom_call.1} parent=0
    _
  %s4 = ssub.s32 1, %s2
  %s5 = scalar_select 0, %s4, %s2
  $region1: #{tpu_custom_call.1} parent=0
    #allocation2 [shape = 'u8[8192]{0}', space=vmem, size = 0x2000, scoped, tag = 'input window, operand 0']
    #allocation3 [shape = 's32[2]{0}', space=sflag, size = 0x8, scoped, tag = 'scoped memory for tpu_custom_call.1']
    #allocation4 [shape = 's32[2]{0}', space=sflag, size = 0x8, scoped, tag = 'scoped memory for tpu_custom_call.1']
    #allocation5 [shape = 'u8[8192]{0}', space=vmem, size = 0x2000, scoped, tag = 'output window, operand 0']
    %6 = vsyncpa [#allocation3], 0
    %s7 = scalar_lea.sflag [#allocation3], 1
    %8 = vsyncpa %s7, 0
    %9 = vsyncpa [#allocation4], 0
    %s10 = scalar_lea.sflag [#allocation4], 1
    %11 = vsyncpa %s10, 0
    loop: start=0, step=1, limit=4
    $region2: #{tpu_custom_call.1} parent=1 // loop_pre_header
      _
    $region3: #{tpu_custom_call.1} parent=1 // loop_header
      %s13 = sphi 0, %s17
      %p14 = scmp.ge.s32.totalorder %s13, 4
      %s23 = sphi 0, %s25
      %s26 = sphi 0, %s23
      %s27 = sphi 0, %s26
      %s43 = sphi 0, %s27
      %s49 = sphi 0, %s51
      %s52 = sphi 0, %s49
      %s53 = sphi 0, %s52
      %s69 = sphi 0, %s53
    $region4: #{tpu_custom_call.1} parent=1 // loop_header_branch
      %16 = sbr.rel (%p14) target = $region8
    $region5: #{tpu_custom_call.1} parent=1 // loop_body
      %s18 = ssub.s32 %s13, 1
      %s19 = ssub.s32 %s13, 2
      %s20 = sadd.s32 %s13, 1
      %s21 = ssub.s32 %s13, %s20
      %p22 = scmp.eq.s32.totalorder %s21, 0
      %s24 = sadd.s32 %s23, 1
      %s25 = scalar_select %p22, %s23, %s24
      %p28 = pneg %p22
      %p29 = scmp.eq.s32.totalorder %s13, 1
      %p30 = por %p28, %p29
      %p31 = scmp.ne.s32.totalorder %s23, %s26
      %p32 = scmp.eq.s32.totalorder %s13, 0
      %p33 = por %p31, %p32
      %p34 = scmp.ne.s32.totalorder %s23, %s26
      %p35 = scmp.eq.s32.totalorder %s18, 1
      %p36 = por %p34, %p35
      %p37 = scmp.ne.s32.totalorder %s26, %s27
      %p38 = scmp.eq.s32.totalorder %s18, 0
      %p39 = por %p37, %p38
      %p40 = scmp.ne.s32.totalorder %s26, %s27
      %p41 = scmp.eq.s32.totalorder %s19, 1
      %p42 = por %p40, %p41
      %p44 = scmp.ne.s32.totalorder %s27, %s43
      %p45 = scmp.eq.s32.totalorder %s19, 0
      %p46 = por %p44, %p45
      %s47 = ssub.s32 %s13, %s20
      %p48 = scmp.eq.s32.totalorder %s47, 0
      %s50 = sadd.s32 %s49, 1
      %s51 = scalar_select %p48, %s49, %s50
      %p54 = pneg %p48
      %p55 = scmp.eq.s32.totalorder %s13, 1
      %p56 = por %p54, %p55
      %p57 = scmp.ne.s32.totalorder %s49, %s52
      %p58 = scmp.eq.s32.totalorder %s13, 0
      %p59 = por %p57, %p58
      %p60 = scmp.ne.s32.totalorder %s49, %s52
      %p61 = scmp.eq.s32.totalorder %s18, 1
      %p62 = por %p60, %p61
      %p63 = scmp.ne.s32.totalorder %s52, %s53
      %p64 = scmp.eq.s32.totalorder %s18, 0
      %p65 = por %p63, %p64
      %p66 = scmp.ne.s32.totalorder %s52, %s53
      %p67 = scmp.eq.s32.totalorder %s19, 1
      %p68 = por %p66, %p67
      %p70 = scmp.ne.s32.totalorder %s53, %s69
      %p71 = scmp.eq.s32.totalorder %s19, 0
      %p72 = por %p70, %p71
      %p73 = scmp.le.s32.totalorder 1, %s13
      %p74 = scmp.lt.s32.totalorder %s13, 3
      %p75 = pnand %p73, %p74
      %p76 = pneg %p75
      // Predicated region
      $region9: #{tpu_custom_call.1} parent=5 // pred_check
        _
      $region10: #{tpu_custom_call.1} parent=5 // pred_check_branch
        %78 = sbr.rel (%p75) target = $region12
      $region11: #{tpu_custom_call.1} parent=5 // pred_region
        %s79 = ssub.s32 %s13, 1
      $region12: #{tpu_custom_call.1} parent=5 // pred_fallthru
        _
      %p80 = scmp.lt.s32.totalorder %s13, 2
      // Predicated region
      $region13: #{tpu_custom_call.1} parent=5 // pred_check
        %p81 = pneg %p80
      $region14: #{tpu_custom_call.1} parent=5 // pred_check_branch
        %83 = sbr.rel (%p81) target = $region16
      $region15: #{tpu_custom_call.1} parent=5 // pred_region
        // Predicated region
        $region17: #{tpu_custom_call.1} parent=15 // pred_check
          %p84 = pneg %p33
        $region18: #{tpu_custom_call.1} parent=15 // pred_check_branch
          %86 = sbr.rel (%p84) target = $region20
        $region19: #{tpu_custom_call.1} parent=15 // pred_region
          %s87 = sand.u32 %s23, 1
          %s88 = scalar_lea.sflag [#allocation3], %s87
          %s89 = sand.u32 %s23, 1
          %s90 = smul.addr %s89, 8
          %s91 = scalar_lea.vmem [#allocation2], %s90
          %s93 = ssub.s32 128, 128
          %94 = vsyncadd %s88, %s93
          %s95 = smul.addr %s13, 128
          %s96 = scalar_lea.hbm %s0, %s95
          %s98 = sshll.u32 %s91, 4
          %s99 = int_to_ptr.vmem [resolvable:$true] %s98
          %101 = dma.hbm_to_vmem [thread:$0]  %s96, 128, %s99, %s88
        $region20: #{tpu_custom_call.1} parent=15 // pred_fallthru
          _
      $region16: #{tpu_custom_call.1} parent=5 // pred_fallthru
        _
      %p102 = scmp.le.s32.totalorder 1, %s13
      %p103 = scmp.lt.s32.totalorder %s13, 3
      %p104 = pnand %p102, %p103
      %p105 = pneg %p104
      // Predicated region
      $region21: #{tpu_custom_call.1} parent=5 // pred_check
        _
      $region22: #{tpu_custom_call.1} parent=5 // pred_check_branch
        %107 = sbr.rel (%p104) target = $region24
      $region23: #{tpu_custom_call.1} parent=5 // pred_region
        %s108 = ssub.s32 %s13, 1
        %s109 = sand.u32 %s26, 1
        %s110 = scalar_lea.sflag [#allocation3], %s109
        %s111 = sand.u32 %s26, 1
        %s112 = smul.addr %s111, 8
        %s113 = scalar_lea.vmem [#allocation2], %s112
        // Predicated region
        $region25: #{tpu_custom_call.1} parent=23 // pred_check
          %p114 = pneg %p39
        $region26: #{tpu_custom_call.1} parent=23 // pred_check_branch
          %116 = sbr.rel (%p114) target = $region28
        $region27: #{tpu_custom_call.1} parent=23 // pred_region
          %117 = dma.done %s110, 128
        $region28: #{tpu_custom_call.1} parent=23 // pred_fallthru
          _
        %s118 = sand.u32 %s26, 1
        %s119 = scalar_lea.sflag [#allocation3], %s118
        %s120 = sand.u32 %s26, 1
        %s121 = smul.addr %s120, 8
        %s122 = scalar_lea.vmem [#allocation2], %s121
        %p123 = pneg %p39
        %p124 = pneg %p36
        %p125 = pneg %p65
        %p126 = pneg %p62
        %s127 = sand.u32 %s52, 1
        %s128 = scalar_lea.sflag [#allocation4], %s127
        %s129 = sand.u32 %s52, 1
        %s130 = smul.addr %s129, 8
        %s131 = scalar_lea.vmem [#allocation5], %s130
        %v132 = vld [vmem:[%s113] sm:$0xff]
        %v133 = vmul.f32 %v132, %v132
        %vm134 = vcmask 261120
        %v135 = vsel %vm134, %v133, 0.0
        %136 = vadd.xlane.f32.xlu0 %v135
        %v137 = vpop.xlane.xlu0 %136
        %v138 = vmax.f32 %v137, 1e-24
        %v139 = vrsqrt.pop %v138
        %v140 = vmul.f32 %v132, %v139
        %141 = vst.msk [vmem:[%s131] sm:$0xff] %vm134, %v140
        %s142 = sand.u32 %s52, 1
        %s143 = scalar_lea.sflag [#allocation4], %s142
        %s144 = sand.u32 %s52, 1
        %s145 = smul.addr %s144, 8
        %s146 = scalar_lea.vmem [#allocation5], %s145
        // Predicated region
        $region29: #{tpu_custom_call.1} parent=23 // pred_check
          %p147 = pneg %p62
        $region30: #{tpu_custom_call.1} parent=23 // pred_check_branch
          %149 = sbr.rel (%p147) target = $region32
        $region31: #{tpu_custom_call.1} parent=23 // pred_region
          %s151 = ssub.s32 128, 128
          %152 = vsyncadd %s143, %s151
          %s153 = smul.addr %s18, 128
          %s154 = scalar_lea.hbm %s1, %s153
          %s156 = sshll.u32 %s146, 4
          %s157 = int_to_ptr.vmem [resolvable:$true] %s156
          %159 = dma.vmem_to_hbm [thread:$0]  %s157, 128, %s154, %s143
        $region32: #{tpu_custom_call.1} parent=23 // pred_fallthru
          _
      $region24: #{tpu_custom_call.1} parent=5 // pred_fallthru
        _
      %p160 = scmp.le.s32.totalorder 2, %s13
      // Predicated region
      $region33: #{tpu_custom_call.1} parent=5 // pred_check
        %p161 = pneg %p160
      $region34: #{tpu_custom_call.1} parent=5 // pred_check_branch
        %163 = sbr.rel (%p161) target = $region36
      $region35: #{tpu_custom_call.1} parent=5 // pred_region
        %s164 = ssub.s32 %s13, 2
        // Predicated region
        $region37: #{tpu_custom_call.1} parent=35 // pred_check
          %p165 = pneg %p68
        $region38: #{tpu_custom_call.1} parent=35 // pred_check_branch
          %167 = sbr.rel (%p165) target = $region40
        $region39: #{tpu_custom_call.1} parent=35 // pred_region
          %s168 = sand.u32 %s53, 1
          %s169 = scalar_lea.sflag [#allocation4], %s168
          %s170 = sand.u32 %s53, 1
          %s171 = smul.addr %s170, 8
          %s172 = scalar_lea.vmem [#allocation5], %s171
          %173 = dma.done %s169, 128
        $region40: #{tpu_custom_call.1} parent=35 // pred_fallthru
          _
      $region36: #{tpu_custom_call.1} parent=5 // pred_fallthru
        _
    $region6: #{tpu_custom_call.1} parent=1 // loop_footer
      %s17 = sadd.s32 1, %s13
    $region7: #{tpu_custom_call.1} parent=1 // loop_footer_branch
      %12 = sbr.rel target = $region3
    $region8: #{tpu_custom_call.1} parent=1 // loop_exit
      _
    %174 = vsyncpa [#allocation3], 1
    %s175 = scalar_lea.sflag [#allocation3], 1
    %176 = vsyncpa %s175, 1
    %177 = vsyncpa [#allocation4], 1
    %s178 = scalar_lea.sflag [#allocation4], 1
    %179 = vsyncpa %s178, 1

</llo_original>
